<compile_context>
chip_gen: v6e
topology: v6e:2x2x1
jax: 0.10.0
libtpu: 0.0.40
codegen_flags: <defaults>
</compile_context>

<pallas_src>
import functools

import jax
import jax.numpy as jnp
from jax.experimental import pallas as pl
from jax.experimental.pallas import tpu as pltpu


def _round_up(n, m):
    return ((n + m - 1) // m) * m


def _channel_gate_kernel(x_ref, w1_ref, b1_ref, w2_ref, b2_ref, o_ref, *, inv_hw):
    # x_ref : (Bt, Cp, HWp)  Bt batch elements, spatial dims flattened on lanes
    # w1_ref: (Cp, Crp)      fc1 weight, pre-transposed (1x1 conv == dense)
    # b1_ref: (1, Crp)       fc1 bias (row vector)
    # w2_ref: (Crp, Cp)      fc2 weight, pre-transposed
    # b2_ref: (1, Cp)        fc2 bias (row vector)
    # o_ref : (Bt, Cp, HWp)

    # Global average pool over the spatial (lane) axis with f32 accumulation,
    # WITHOUT materializing a full f32 copy of the tile.
    pooled = jnp.sum(x_ref[...], axis=2, dtype=jnp.float32) * inv_hw   # (Bt, Cp)

    # Tiny channel MLP in row orientation (no transposes); N = Bt on the MXU.
    h = jnp.dot(pooled, w1_ref[...], preferred_element_type=jnp.float32)
    h = jnp.maximum(h + b1_ref[...], 0.0)                              # (Bt, Crp)
    g = jnp.dot(h, w2_ref[...], preferred_element_type=jnp.float32)
    gate = jax.nn.sigmoid(g + b2_ref[...])                             # (Bt, Cp)

    # Per-channel gate broadcast across lanes; final scale in the INPUT dtype
    # so no second full-size f32 intermediate is ever carried.
    o_ref[...] = gate.astype(o_ref.dtype)[:, :, None] * x_ref[...]


def channel_gate_2d(x, w1, b1, w2, b2, *, vmem_target_bytes=24 << 20):
    """x: (B, C, H, W); w1: (Cr, C); b1: (Cr,); w2: (C, Cr); b2: (C,).

    Returns sigmoid(fc2(relu(fc1(avgpool(x))))) * x, matching
    ChannelGate2d.forward (Conv2d 1x1 == dense over the channel axis).
    """
    B, C, H, W = x.shape
    Cr = w1.shape[0]
    HW = H * W
    itemsize = jnp.dtype(x.dtype).itemsize

    # Lane/sublane-dense padded tile sizes (unmasked vst on the output).
    Cp = _round_up(C, 8)
    Crp = _round_up(Cr, 8)
    HWp = _round_up(HW, 128)

    x2 = x.reshape(B, C, HW)
    if (Cp, HWp) != (C, HW):
        x2 = jnp.pad(x2, ((0, 0), (0, Cp - C), (0, HWp - HW)))

    # 1x1 convs are dense layers over channels; transpose + zero-pad once in
    # the wrapper so the kernel stays transpose-free.
    w1t = jnp.pad(w1.astype(jnp.float32).T, ((0, Cp - C), (0, Crp - Cr)))
    b1r = jnp.pad(b1.astype(jnp.float32), (0, Crp - Cr)).reshape(1, Crp)
    w2t = jnp.pad(w2.astype(jnp.float32).T, ((0, Crp - Cr), (0, Cp - C)))
    b2r = jnp.pad(b2.astype(jnp.float32), (0, Cp - C)).reshape(1, Cp)

    # ---- batch elements per grid step (Bt) ----------------------------------
    # Pipelined working set per step ~ double-buffered in + out = 4 slabs.
    slab = Cp * HWp * itemsize
    bt_cap = max(1, int(vmem_target_bytes // (4 * slab)))
    divisors = [d for d in range(1, B + 1) if B % d == 0 and d <= bt_cap]
    # Prefer >= 2 grid steps so "parallel" can shard batch over v7x's 2 TCs.
    pref = [d for d in divisors if B // d >= 2]
    Bt = max(pref) if pref else (max(divisors) if divisors else 1)
    grid = (B // Bt,)

    # Explicit VMEM budget: double-buffered x in/out + (double-buffered, they
    # are tiny) weights + small f32 intermediates + slack.
    weight_bytes = (2 * Cp * Crp + Crp + Cp) * 4
    scratch_bytes = 8 * Bt * Cp * 4
    needed = 4 * Bt * slab + 2 * weight_bytes + scratch_bytes + (2 << 20)
    vmem_limit = int(min(max(needed, 16 << 20), 110 << 20))

    cost = pl.CostEstimate(
        flops=int(B * (3 * C * HW + 4 * C * Cr)),
        transcendentals=int(B * C),
        bytes_accessed=int(2 * B * C * HW * itemsize),
    )

    kernel = functools.partial(_channel_gate_kernel, inv_hw=1.0 / HW)

    out = pl.pallas_call(
        kernel,
        out_shape=jax.ShapeDtypeStruct((B, Cp, HWp), x.dtype),
        grid=grid,
        in_specs=[
            pl.BlockSpec((Bt, Cp, HWp), lambda b: (b, 0, 0)),
            pl.BlockSpec((Cp, Crp), lambda b: (0, 0)),
            pl.BlockSpec((1, Crp), lambda b: (0, 0)),
            pl.BlockSpec((Crp, Cp), lambda b: (0, 0)),
            pl.BlockSpec((1, Cp), lambda b: (0, 0)),
        ],
        out_specs=pl.BlockSpec((Bt, Cp, HWp), lambda b: (b, 0, 0)),
        compiler_params=pltpu.CompilerParams(
            dimension_semantics=("parallel",),
            vmem_limit_bytes=vmem_limit,
        ),
        cost_estimate=cost,
    )(x2, w1t, b1r, w2t, b2r)

    return out[:, :C, :HW].reshape(B, C, H, W)


def _reference(x, w1, b1, w2, b2):
    # Pure-JAX f32 reference mirroring the PyTorch forward.
    xf = x.astype(jnp.float32)
    pooled = xf.mean(axis=(2, 3))                                          # (B, C)
    h = jnp.maximum(pooled @ w1.astype(jnp.float32).T + b1.astype(jnp.float32), 0.0)
    gate = jax.nn.sigmoid(h @ w2.astype(jnp.float32).T + b2.astype(jnp.float32))
    return gate[:, :, None, None] * xf


if __name__ == "__main__":
    key = jax.random.PRNGKey(0)

    # Case 1: f32, small aligned-ish shapes.
    B, C, H, W = 2, 4, 16, 16
    Cr = C // 2
    kx, k1, k2, k3, k4, krest = jax.random.split(key, 6)
    x = jax.random.normal(kx, (B, C, H, W), dtype=jnp.float32)
    w1 = jax.random.normal(k1, (Cr, C), dtype=jnp.float32) * 0.5
    b1 = jax.random.normal(k2, (Cr,), dtype=jnp.float32) * 0.1
    w2 = jax.random.normal(k3, (C, Cr), dtype=jnp.float32) * 0.5
    b2 = jax.random.normal(k4, (C,), dtype=jnp.float32) * 0.1

    out = jax.block_until_ready(channel_gate_2d(x, w1, b1, w2, b2))
    ref = _reference(x, w1, b1, w2, b2)
    assert out.shape == (B, C, H, W), out.shape
    assert jnp.allclose(out, ref, atol=1e-5, rtol=1e-5), "f32 mismatch vs reference"

    # Case 2: bf16 input, HW=49 (not a multiple of 128) and C=6 (not a multiple
    # of 8) — exercises the padding path and the low-precision final multiply.
    B2, C2, H2, W2 = 3, 6, 7, 7
    Cr2 = C2 // 2
    ks = jax.random.split(krest, 5)
    xb = jax.random.normal(ks[0], (B2, C2, H2, W2), dtype=jnp.float32).astype(jnp.bfloat16)
    w1b = jax.random.normal(ks[1], (Cr2, C2), dtype=jnp.float32) * 0.5
    b1b = jax.random.normal(ks[2], (Cr2,), dtype=jnp.float32) * 0.1
    w2b = jax.random.normal(ks[3], (C2, Cr2), dtype=jnp.float32) * 0.5
    b2b = jax.random.normal(ks[4], (C2,), dtype=jnp.float32) * 0.1

    outb = jax.block_until_ready(channel_gate_2d(xb, w1b, b1b, w2b, b2b))
    refb = _reference(xb, w1b, b1b, w2b, b2b)
    assert outb.shape == (B2, C2, H2, W2), outb.shape
    assert outb.dtype == jnp.bfloat16, outb.dtype
    assert jnp.allclose(outb.astype(jnp.float32), refb, atol=5e-2, rtol=5e-2), \
        "bf16 mismatch vs reference"

    print("KERNEL_OK")
</pallas_src>

<mosaic_0001>
module attributes {stable_mosaic.version = 11 : i64} {
  func.func @_channel_gate_kernel(%arg0: i32, %arg1: memref<1x8x256xf32, #tpu.memory_space<vmem>>, %arg2: memref<8x8xf32, #tpu.memory_space<vmem>>, %arg3: memref<1x8xf32, #tpu.memory_space<vmem>>, %arg4: memref<8x8xf32, #tpu.memory_space<vmem>>, %arg5: memref<1x8xf32, #tpu.memory_space<vmem>>, %arg6: memref<1x8x256xf32, #tpu.memory_space<vmem>>) attributes {dimension_semantics = [#tpu.dimension_semantics<parallel>], iteration_bounds = array<i64: 2>, scalar_prefetch = 0 : i64, scratch_operands = 0 : i64, tpu.core_type = #tpu.core_type<tc>, window_params = [{transform_indices = @transform_0, window_bounds = array<i64: 1, 8, 256>}, {pipeline_mode = #tpu.pipeline_mode<synchronous>, transform_indices = @transform_1, window_bounds = array<i64: 8, 8>}, {pipeline_mode = #tpu.pipeline_mode<synchronous>, transform_indices = @transform_2, window_bounds = array<i64: 1, 8>}, {pipeline_mode = #tpu.pipeline_mode<synchronous>, transform_indices = @transform_3, window_bounds = array<i64: 8, 8>}, {pipeline_mode = #tpu.pipeline_mode<synchronous>, transform_indices = @transform_4, window_bounds = array<i64: 1, 8>}, {transform_indices = @transform_5, window_bounds = array<i64: 1, 8, 256>}]} {
    %c0 = arith.constant 0 : index
    %c0_0 = arith.constant 0 : index
    %c0_1 = arith.constant 0 : index
    %0 = vector.load %arg1[%c0, %c0_0, %c0_1] : memref<1x8x256xf32, #tpu.memory_space<vmem>>, vector<1x8x256xf32>
    %cst = arith.constant dense<0.000000e+00> : vector<1x8xf32>
    %1 = vector.multi_reduction <add>, %0, %cst [2] : vector<1x8x256xf32> to vector<1x8xf32>
    %cst_2 = arith.constant 3.906250e-03 : f32
    %2 = vector.broadcast %cst_2 : f32 to vector<1x8xf32>
    %3 = arith.mulf %1, %2 : vector<1x8xf32>
    %c0_3 = arith.constant 0 : index
    %c0_4 = arith.constant 0 : index
    %4 = vector.load %arg2[%c0_3, %c0_4] : memref<8x8xf32, #tpu.memory_space<vmem>>, vector<8x8xf32>
    %cst_5 = arith.constant dense<0.000000e+00> : vector<1x8xf32>
    %5 = tpu.matmul %3, %4, %cst_5 {dimension_numbers = #tpu.dot_dimension_numbers<[1], [0], [0], [1], [0, 0, 1, 1], [], []>} : vector<1x8xf32>, vector<8x8xf32>, vector<1x8xf32> -> vector<1x8xf32>
    %c0_6 = arith.constant 0 : index
    %c0_7 = arith.constant 0 : index
    %6 = vector.load %arg3[%c0_6, %c0_7] : memref<1x8xf32, #tpu.memory_space<vmem>>, vector<1x8xf32>
    %7 = arith.addf %5, %6 : vector<1x8xf32>
    %cst_8 = arith.constant 0.000000e+00 : f32
    %8 = vector.broadcast %cst_8 : f32 to vector<1x8xf32>
    %9 = arith.maximumf %7, %8 : vector<1x8xf32>
    %c0_9 = arith.constant 0 : index
    %c0_10 = arith.constant 0 : index
    %10 = vector.load %arg4[%c0_9, %c0_10] : memref<8x8xf32, #tpu.memory_space<vmem>>, vector<8x8xf32>
    %cst_11 = arith.constant dense<0.000000e+00> : vector<1x8xf32>
    %11 = tpu.matmul %9, %10, %cst_11 {dimension_numbers = #tpu.dot_dimension_numbers<[1], [0], [0], [1], [0, 0, 1, 1], [], []>} : vector<1x8xf32>, vector<8x8xf32>, vector<1x8xf32> -> vector<1x8xf32>
    %c0_12 = arith.constant 0 : index
    %c0_13 = arith.constant 0 : index
    %12 = vector.load %arg5[%c0_12, %c0_13] : memref<1x8xf32, #tpu.memory_space<vmem>>, vector<1x8xf32>
    %13 = arith.addf %11, %12 : vector<1x8xf32>
    %14 = arith.negf %13 : vector<1x8xf32>
    %15 = math.exp %14 : vector<1x8xf32>
    %cst_14 = arith.constant 1.000000e+00 : f32
    %16 = vector.broadcast %cst_14 : f32 to vector<1x8xf32>
    %17 = arith.addf %16, %15 : vector<1x8xf32>
    %18 = arith.divf %16, %17 : vector<1x8xf32>
    %19 = vector.shape_cast %18 : vector<1x8xf32> to vector<1x8x1xf32>
    %c0_15 = arith.constant 0 : index
    %c0_16 = arith.constant 0 : index
    %c0_17 = arith.constant 0 : index
    %20 = vector.load %arg1[%c0_15, %c0_16, %c0_17] : memref<1x8x256xf32, #tpu.memory_space<vmem>>, vector<1x8x256xf32>
    %21 = vector.broadcast %19 : vector<1x8x1xf32> to vector<1x8x256xf32>
    %22 = arith.mulf %21, %20 : vector<1x8x256xf32>
    %c0_18 = arith.constant 0 : index
    %c0_19 = arith.constant 0 : index
    %c0_20 = arith.constant 0 : index
    %23 = vector.load %arg6[%c0_18, %c0_19, %c0_20] : memref<1x8x256xf32, #tpu.memory_space<vmem>>, vector<1x8x256xf32>
    tpu.vector_store %arg6[%c0_18, %c0_19, %c0_20], %22 {strides = array<i32>} : memref<1x8x256xf32, #tpu.memory_space<vmem>>, vector<1x8x256xf32>,
    return
  }
  func.func @transform_0(%arg0: i32) -> (i32, i32, i32) {
    %c0_i32 = arith.constant 0 : i32
    %c0_i32_0 = arith.constant 0 : i32
    %c0_i32_1 = arith.constant 0 : i32
    return %arg0, %c0_i32, %c0_i32_0 : i32, i32, i32
  }
  func.func @transform_1(%arg0: i32) -> (i32, i32) {
    %c0_i32 = arith.constant 0 : i32
    %c0_i32_0 = arith.constant 0 : i32
    %c0_i32_1 = arith.constant 0 : i32
    return %c0_i32, %c0_i32_0 : i32, i32
  }
  func.func @transform_2(%arg0: i32) -> (i32, i32) {
    %c0_i32 = arith.constant 0 : i32
    %c0_i32_0 = arith.constant 0 : i32
    %c0_i32_1 = arith.constant 0 : i32
    return %c0_i32, %c0_i32_0 : i32, i32
  }
  func.func @transform_3(%arg0: i32) -> (i32, i32) {
    %c0_i32 = arith.constant 0 : i32
    %c0_i32_0 = arith.constant 0 : i32
    %c0_i32_1 = arith.constant 0 : i32
    return %c0_i32, %c0_i32_0 : i32, i32
  }
  func.func @transform_4(%arg0: i32) -> (i32, i32) {
    %c0_i32 = arith.constant 0 : i32
    %c0_i32_0 = arith.constant 0 : i32
    %c0_i32_1 = arith.constant 0 : i32
    return %c0_i32, %c0_i32_0 : i32, i32
  }
  func.func @transform_5(%arg0: i32) -> (i32, i32, i32) {
    %c0_i32 = arith.constant 0 : i32
    %c0_i32_0 = arith.constant 0 : i32
    %c0_i32_1 = arith.constant 0 : i32
    return %arg0, %c0_i32, %c0_i32_0 : i32, i32, i32
  }
}

</mosaic_0001>

<llo_original>
// kernel: tpu_custom_call.1
$region0: #{tpu_custom_call.1}
  #allocation0 [shape = 'u32[]', space=smem, size = 0x4, offset = 0x4, fixed_abs, tag = 'smem constant byte address 0x4 - core index']
  #allocation1 [shape = 'u32[144,128]{1,0:T(1,128)}', space=vmem, size = 0x12000, scoped, tag = 'internal scratch']
  %s0 = inlined_call_operand.hbm [shape: f32[2,8,256], index: 0, kind: input, shape index: {}]
  %s1 = inlined_call_operand.hbm [shape: f32[8,8], index: 1, kind: input, shape index: {}]
  %s2 = inlined_call_operand.vmem [shape: f32[1,8], index: 2, kind: input, shape index: {}]
  %s3 = inlined_call_operand.hbm [shape: f32[8,8], index: 3, kind: input, shape index: {}]
  %s4 = inlined_call_operand.vmem [shape: f32[1,8], index: 4, kind: input, shape index: {}]
  %s5 = inlined_call_operand.hbm [shape: f32[2,8,256], index: 5, kind: output, shape index: {}]
  %s6 = sld [smem:[#allocation0]]
  $region65: #{tpu_custom_call.1} parent=0
    _
  %s8 = ssub.s32 1, %s6
  %s9 = scalar_select 0, %s8, %s6
  $region1: #{tpu_custom_call.1} parent=0
    #allocation2 [shape = 'u8[16384]{0}', space=vmem, size = 0x4000, scoped, tag = 'input window, operand 0']
    #allocation3 [shape = 's32[2]{0}', space=sflag, size = 0x8, scoped, tag = 'scoped memory for tpu_custom_call.1']
    #allocation4 [shape = 's32[2]{0}', space=sflag, size = 0x8, scoped, tag = 'scoped memory for tpu_custom_call.1']
    #allocation5 [shape = 'u8[4096]{0}', space=vmem, size = 0x1000, scoped, tag = 'input window, operand 1, single buffered']
    #allocation6 [shape = 's32[1]{0}', space=sflag, size = 0x4, scoped, tag = 'scoped memory for tpu_custom_call.1']
    #allocation7 [shape = 'u8[4096]{0}', space=vmem, size = 0x1000, scoped, tag = 'input window, operand 3, single buffered']
    #allocation8 [shape = 'u8[16384]{0}', space=vmem, size = 0x4000, scoped, tag = 'output window, operand 0']
    %10 = vsyncpa [#allocation3], 0
    %s11 = scalar_lea.sflag [#allocation3], 1
    %12 = vsyncpa %s11, 0
    %13 = vsyncpa [#allocation6], 0
    %14 = vsyncpa [#allocation4], 0
    %s15 = scalar_lea.sflag [#allocation4], 1
    %16 = vsyncpa %s15, 0
    loop: start=0, step=1, limit=4
    $region2: #{tpu_custom_call.1} parent=1 // loop_pre_header
      _
    $region3: #{tpu_custom_call.1} parent=1 // loop_header
      %s18 = sphi 0, %s22
      %p19 = scmp.ge.s32.totalorder %s18, 4
      %s28 = sphi 0, %s30
      %s31 = sphi 0, %s28
      %s32 = sphi 0, %s31
      %s48 = sphi 0, %s32
      %s52 = sphi 0, %s52
      %s54 = sphi 0, %s52
      %s55 = sphi 0, %s54
      %s69 = sphi 0, %s55
      %s73 = sphi 0, %s73
      %s75 = sphi 0, %s73
      %s76 = sphi 0, %s75
      %s90 = sphi 0, %s76
      %s94 = sphi 0, %s94
      %s96 = sphi 0, %s94
      %s97 = sphi 0, %s96
      %s111 = sphi 0, %s97
      %s115 = sphi 0, %s115
      %s117 = sphi 0, %s115
      %s118 = sphi 0, %s117
      %s132 = sphi 0, %s118
      %s138 = sphi 0, %s140
      %s141 = sphi 0, %s138
      %s142 = sphi 0, %s141
      %s158 = sphi 0, %s142
    $region4: #{tpu_custom_call.1} parent=1 // loop_header_branch
      %21 = sbr.rel (%p19) target = $region8
    $region5: #{tpu_custom_call.1} parent=1 // loop_body
      %s23 = ssub.s32 %s18, 1
      %s24 = ssub.s32 %s18, 2
      %s25 = sadd.s32 %s18, 1
      %s26 = ssub.s32 %s18, %s25
      %p27 = scmp.eq.s32.totalorder %s26, 0
      %s29 = sadd.s32 %s28, 1
      %s30 = scalar_select %p27, %s28, %s29
      %p33 = pneg %p27
      %p34 = scmp.eq.s32.totalorder %s18, 1
      %p35 = por %p33, %p34
      %p36 = scmp.ne.s32.totalorder %s28, %s31
      %p37 = scmp.eq.s32.totalorder %s18, 0
      %p38 = por %p36, %p37
      %p39 = scmp.ne.s32.totalorder %s28, %s31
      %p40 = scmp.eq.s32.totalorder %s23, 1
      %p41 = por %p39, %p40
      %p42 = scmp.ne.s32.totalorder %s31, %s32
      %p43 = scmp.eq.s32.totalorder %s23, 0
      %p44 = por %p42, %p43
      %p45 = scmp.ne.s32.totalorder %s31, %s32
      %p46 = scmp.eq.s32.totalorder %s24, 1
      %p47 = por %p45, %p46
      %p49 = scmp.ne.s32.totalorder %s32, %s48
      %p50 = scmp.eq.s32.totalorder %s24, 0
      %p51 = por %p49, %p50
      %s53 = sadd.s32 %s52, 1
      %p56 = scmp.eq.s32.totalorder %s18, 1
      %p57 = scmp.ne.s32.totalorder %s52, %s54
      %p58 = scmp.eq.s32.totalorder %s18, 0
      %p59 = por %p57, %p58
      %p60 = scmp.ne.s32.totalorder %s52, %s54
      %p61 = scmp.eq.s32.totalorder %s23, 1
      %p62 = por %p60, %p61
      %p63 = scmp.ne.s32.totalorder %s54, %s55
      %p64 = scmp.eq.s32.totalorder %s23, 0
      %p65 = por %p63, %p64
      %p66 = scmp.ne.s32.totalorder %s54, %s55
      %p67 = scmp.eq.s32.totalorder %s24, 1
      %p68 = por %p66, %p67
      %p70 = scmp.ne.s32.totalorder %s55, %s69
      %p71 = scmp.eq.s32.totalorder %s24, 0
      %p72 = por %p70, %p71
      %s74 = sadd.s32 %s73, 1
      %p77 = scmp.eq.s32.totalorder %s18, 1
      %p78 = scmp.ne.s32.totalorder %s73, %s75
      %p79 = scmp.eq.s32.totalorder %s18, 0
      %p80 = por %p78, %p79
      %p81 = scmp.ne.s32.totalorder %s73, %s75
      %p82 = scmp.eq.s32.totalorder %s23, 1
      %p83 = por %p81, %p82
      %p84 = scmp.ne.s32.totalorder %s75, %s76
      %p85 = scmp.eq.s32.totalorder %s23, 0
      %p86 = por %p84, %p85
      %p87 = scmp.ne.s32.totalorder %s75, %s76
      %p88 = scmp.eq.s32.totalorder %s24, 1
      %p89 = por %p87, %p88
      %p91 = scmp.ne.s32.totalorder %s76, %s90
      %p92 = scmp.eq.s32.totalorder %s24, 0
      %p93 = por %p91, %p92
      %s95 = sadd.s32 %s94, 1
      %p98 = scmp.eq.s32.totalorder %s18, 1
      %p99 = scmp.ne.s32.totalorder %s94, %s96
      %p100 = scmp.eq.s32.totalorder %s18, 0
      %p101 = por %p99, %p100
      %p102 = scmp.ne.s32.totalorder %s94, %s96
      %p103 = scmp.eq.s32.totalorder %s23, 1
      %p104 = por %p102, %p103
      %p105 = scmp.ne.s32.totalorder %s96, %s97
      %p106 = scmp.eq.s32.totalorder %s23, 0
      %p107 = por %p105, %p106
      %p108 = scmp.ne.s32.totalorder %s96, %s97
      %p109 = scmp.eq.s32.totalorder %s24, 1
      %p110 = por %p108, %p109
      %p112 = scmp.ne.s32.totalorder %s97, %s111
      %p113 = scmp.eq.s32.totalorder %s24, 0
      %p114 = por %p112, %p113
      %s116 = sadd.s32 %s115, 1
      %p119 = scmp.eq.s32.totalorder %s18, 1
      %p120 = scmp.ne.s32.totalorder %s115, %s117
      %p121 = scmp.eq.s32.totalorder %s18, 0
      %p122 = por %p120, %p121
      %p123 = scmp.ne.s32.totalorder %s115, %s117
      %p124 = scmp.eq.s32.totalorder %s23, 1
      %p125 = por %p123, %p124
      %p126 = scmp.ne.s32.totalorder %s117, %s118
      %p127 = scmp.eq.s32.totalorder %s23, 0
      %p128 = por %p126, %p127
      %p129 = scmp.ne.s32.totalorder %s117, %s118
      %p130 = scmp.eq.s32.totalorder %s24, 1
      %p131 = por %p129, %p130
      %p133 = scmp.ne.s32.totalorder %s118, %s132
      %p134 = scmp.eq.s32.totalorder %s24, 0
      %p135 = por %p133, %p134
      %s136 = ssub.s32 %s18, %s25
      %p137 = scmp.eq.s32.totalorder %s136, 0
      %s139 = sadd.s32 %s138, 1
      %s140 = scalar_select %p137, %s138, %s139
      %p143 = pneg %p137
      %p144 = scmp.eq.s32.totalorder %s18, 1
      %p145 = por %p143, %p144
      %p146 = scmp.ne.s32.totalorder %s138, %s141
      %p147 = scmp.eq.s32.totalorder %s18, 0
      %p148 = por %p146, %p147
      %p149 = scmp.ne.s32.totalorder %s138, %s141
      %p150 = scmp.eq.s32.totalorder %s23, 1
      %p151 = por %p149, %p150
      %p152 = scmp.ne.s32.totalorder %s141, %s142
      %p153 = scmp.eq.s32.totalorder %s23, 0
      %p154 = por %p152, %p153
      %p155 = scmp.ne.s32.totalorder %s141, %s142
      %p156 = scmp.eq.s32.totalorder %s24, 1
      %p157 = por %p155, %p156
      %p159 = scmp.ne.s32.totalorder %s142, %s158
      %p160 = scmp.eq.s32.totalorder %s24, 0
      %p161 = por %p159, %p160
      %p162 = scmp.le.s32.totalorder 1, %s18
      %p163 = scmp.lt.s32.totalorder %s18, 3
      %p164 = pnand %p162, %p163
      %p165 = pneg %p164
      // Predicated region
      $region9: #{tpu_custom_call.1} parent=5 // pred_check
        _
      $region10: #{tpu_custom_call.1} parent=5 // pred_check_branch
        %167 = sbr.rel (%p164) target = $region12
      $region11: #{tpu_custom_call.1} parent=5 // pred_region
        %s168 = ssub.s32 %s18, 1
        // Predicated region
        $region13: #{tpu_custom_call.1} parent=11 // pred_check
          %p169 = pneg %p65
        $region14: #{tpu_custom_call.1} parent=11 // pred_check_branch
          %171 = sbr.rel (%p169) target = $region16
        $region15: #{tpu_custom_call.1} parent=11 // pred_region
          %s173 = ssub.s32 128, 128
          %174 = vsyncadd [#allocation6], %s173
          %s176 = sshll.u32 [#allocation5], 4
          %s177 = int_to_ptr.vmem [resolvable:$true] %s176
          %179 = dma.hbm_to_vmem [thread:$0]  %s1, 128, %s177, [#allocation6]
        $region16: #{tpu_custom_call.1} parent=11 // pred_fallthru
          _
        // Predicated region
        $region17: #{tpu_custom_call.1} parent=11 // pred_check
          %p180 = pneg %p86
        $region18: #{tpu_custom_call.1} parent=11 // pred_check_branch
          %182 = sbr.rel (%p180) target = $region20
        $region19: #{tpu_custom_call.1} parent=11 // pred_region
          _
        $region20: #{tpu_custom_call.1} parent=11 // pred_fallthru
          _
        // Predicated region
        $region21: #{tpu_custom_call.1} parent=11 // pred_check
          %p183 = pneg %p107
        $region22: #{tpu_custom_call.1} parent=11 // pred_check_branch
          %185 = sbr.rel (%p183) target = $region24
        $region23: #{tpu_custom_call.1} parent=11 // pred_region
          %s187 = ssub.s32 128, 128
          %188 = vsyncadd [#allocation6], %s187
          %s190 = sshll.u32 [#allocation7], 4
          %s191 = int_to_ptr.vmem [resolvable:$true] %s190
          %193 = dma.hbm_to_vmem [thread:$0]  %s3, 128, %s191, [#allocation6]
        $region24: #{tpu_custom_call.1} parent=11 // pred_fallthru
          _
        // Predicated region
        $region25: #{tpu_custom_call.1} parent=11 // pred_check
          %p194 = pneg %p128
        $region26: #{tpu_custom_call.1} parent=11 // pred_check_branch
          %196 = sbr.rel (%p194) target = $region28
        $region27: #{tpu_custom_call.1} parent=11 // pred_region
          _
        $region28: #{tpu_custom_call.1} parent=11 // pred_fallthru
          _
      $region12: #{tpu_custom_call.1} parent=5 // pred_fallthru
        _
      %p197 = scmp.lt.s32.totalorder %s18, 2
      // Predicated region
      $region29: #{tpu_custom_call.1} parent=5 // pred_check
        %p198 = pneg %p197
      $region30: #{tpu_custom_call.1} parent=5 // pred_check_branch
        %200 = sbr.rel (%p198) target = $region32
      $region31: #{tpu_custom_call.1} parent=5 // pred_region
        // Predicated region
        $region33: #{tpu_custom_call.1} parent=31 // pred_check
          %p201 = pneg %p38
        $region34: #{tpu_custom_call.1} parent=31 // pred_check_branch
          %203 = sbr.rel (%p201) target = $region36
        $region35: #{tpu_custom_call.1} parent=31 // pred_region
          %s204 = sand.u32 %s28, 1
          %s205 = scalar_lea.sflag [#allocation3], %s204
          %s206 = sand.u32 %s28, 1
          %s207 = smul.addr %s206, 16
          %s208 = scalar_lea.vmem [#allocation2], %s207
          %s210 = ssub.s32 256, 256
          %211 = vsyncadd %s205, %s210
          %s212 = smul.addr %s18, 2
          %s213 = smul.addr %s212, 128
          %s214 = scalar_lea.hbm %s0, %s213
          %s216 = sshll.u32 %s208, 4
          %s217 = int_to_ptr.vmem [resolvable:$true] %s216
          %219 = dma.hbm_to_vmem [thread:$0]  %s214, 256, %s217, %s205
        $region36: #{tpu_custom_call.1} parent=31 // pred_fallthru
          _
      $region32: #{tpu_custom_call.1} parent=5 // pred_fallthru
        _
      %p220 = scmp.le.s32.totalorder 1, %s18
      %p221 = scmp.lt.s32.totalorder %s18, 3
      %p222 = pnand %p220, %p221
      %p223 = pneg %p222
      // Predicated region
      $region37: #{tpu_custom_call.1} parent=5 // pred_check
        _
      $region38: #{tpu_custom_call.1} parent=5 // pred_check_branch
        %225 = sbr.rel (%p222) target = $region40
      $region39: #{tpu_custom_call.1} parent=5 // pred_region
        %s226 = ssub.s32 %s18, 1
        %s227 = sand.u32 %s31, 1
        %s228 = scalar_lea.sflag [#allocation3], %s227
        %s229 = sand.u32 %s31, 1
        %s230 = smul.addr %s229, 16
        %s231 = scalar_lea.vmem [#allocation2], %s230
        // Predicated region
        $region41: #{tpu_custom_call.1} parent=39 // pred_check
          %p232 = pneg %p44
        $region42: #{tpu_custom_call.1} parent=39 // pred_check_branch
          %234 = sbr.rel (%p232) target = $region44
        $region43: #{tpu_custom_call.1} parent=39 // pred_region
          %235 = dma.done %s228, 256
        $region44: #{tpu_custom_call.1} parent=39 // pred_fallthru
          _
        // Predicated region
        $region45: #{tpu_custom_call.1} parent=39 // pred_check
          %p236 = pneg %p65
        $region46: #{tpu_custom_call.1} parent=39 // pred_check_branch
          %238 = sbr.rel (%p236) target = $region48
        $region47: #{tpu_custom_call.1} parent=39 // pred_region
          %239 = dma.done [#allocation6], 128
        $region48: #{tpu_custom_call.1} parent=39 // pred_fallthru
          _
        // Predicated region
        $region49: #{tpu_custom_call.1} parent=39 // pred_check
          %p240 = pneg %p107
        $region50: #{tpu_custom_call.1} parent=39 // pred_check_branch
          %242 = sbr.rel (%p240) target = $region52
        $region51: #{tpu_custom_call.1} parent=39 // pred_region
          %243 = dma.done [#allocation6], 128
        $region52: #{tpu_custom_call.1} parent=39 // pred_fallthru
          _
        %s244 = sand.u32 %s31, 1
        %s245 = scalar_lea.sflag [#allocation3], %s244
        %s246 = sand.u32 %s31, 1
        %s247 = smul.addr %s246, 16
        %s248 = scalar_lea.vmem [#allocation2], %s247
        %p249 = pneg %p44
        %p250 = pneg %p41
        %p251 = pneg %p65
        %p252 = pneg %p62
        %p253 = pneg %p86
        %p254 = pneg %p83
        %p255 = pneg %p107
        %p256 = pneg %p104
        %p257 = pneg %p128
        %p258 = pneg %p125
        %p259 = pneg %p154
        %p260 = pneg %p151
        %s261 = sand.u32 %s141, 1
        %s262 = scalar_lea.sflag [#allocation4], %s261
        %s263 = sand.u32 %s141, 1
        %s264 = smul.addr %s263, 16
        %s265 = scalar_lea.vmem [#allocation8], %s264
        %v266 = vld [vmem:[%s231] sm:$0xff]
        %v267 = vld [vmem:[%s231 + $0x8] sm:$0xff]
        %v268 = vadd.f32 %v266, %v267
        %269 = vadd.xlane.f32.xlu0 %v268
        %v270 = vpop.xlane.xlu0 %269
        %v271 = vmul.f32 %v270, 0.00390625
        %v272 = vld [vmem:[#allocation5] sm:$0xff]
        %v273 = vld [vmem:[%s2] sm:$0x1]
        %v275 = vlaneseq
        %v276 = vand.u32 %v275, 127
        %v277 = vlaneseq
        %v278 = vshrl.u32 %v277, 7
        %v279 = vsub.s32 %v276, %v278
        %v280 = vrot.slane %v271, %v279
        %vm281 = vcmask 64512
        %v282 = vsel %vm281, %v280, 0
        %284 = vmatprep.subr.mxu0 0.0
        %285 = vmatpush1.msra.mxu0 0.0
        %286 = vmatprep.subr.mxu0 0.0
        %287 = vmatpush1.msra.mxu0 0.0
        %288 = vmatprep.subr.mxu0 0.0
        %289 = vmatpush1.msra.mxu0 0.0
        %290 = vmatprep.subr.mxu0 0.0
        %291 = vmatpush1.msra.mxu0 0.0
        %292 = vmatprep.subr.mxu0 0.0
        %293 = vmatpush1.msra.mxu0 0.0
        %294 = vmatprep.subr.mxu0 0.0
        %295 = vmatpush1.msra.mxu0 0.0
        %296 = vmatprep.subr.mxu0 0.0
        %297 = vmatpush1.msra.mxu0 0.0
        %298 = vmatprep.subr.mxu0 0.0
        %299 = vmatpush1.msra.mxu0 0.0
        %300 = vmatprep.subr.mxu0 0.0
        %301 = vmatpush1.msra.mxu0 0.0
        %302 = vmatprep.subr.mxu0 0.0
        %303 = vmatpush1.msra.mxu0 0.0
        %304 = vmatprep.subr.mxu0 0.0
        %305 = vmatpush1.msra.mxu0 0.0
        %306 = vmatprep.subr.mxu0 0.0
        %307 = vmatpush1.msra.mxu0 0.0
        %308 = vmatprep.subr.mxu0 0.0
        %309 = vmatpush1.msra.mxu0 0.0
        %310 = vmatprep.subr.mxu0 0.0
        %311 = vmatpush1.msra.mxu0 0.0
        %312 = vmatprep.subr.mxu0 0.0
        %313 = vmatpush1.msra.mxu0 0.0
        %314 = vmatprep.subr.mxu0 0.0
        %315 = vmatpush1.msra.mxu0 %v272
        %316 = vmatprep.subr.mxu0 0.0
        %317 = vmatpush2.msra.mxu0 0.0
        %318 = vmatprep.subr.mxu0 0.0
        %319 = vmatpush2.msra.mxu0 0.0
        %320 = vmatprep.subr.mxu0 0.0
        %321 = vmatpush2.msra.mxu0 0.0
        %322 = vmatprep.subr.mxu0 0.0
        %323 = vmatpush2.msra.mxu0 0.0
        %324 = vmatprep.subr.mxu0 0.0
        %325 = vmatpush2.msra.mxu0 0.0
        %326 = vmatprep.subr.mxu0 0.0
        %327 = vmatpush2.msra.mxu0 0.0
        %328 = vmatprep.subr.mxu0 0.0
        %329 = vmatpush2.msra.mxu0 0.0
        %330 = vmatprep.subr.mxu0 0.0
        %331 = vmatpush2.msra.mxu0 0.0
        %332 = vmatprep.subr.mxu0 0.0
        %333 = vmatpush2.msra.mxu0 0.0
        %334 = vmatprep.subr.mxu0 0.0
        %335 = vmatpush2.msra.mxu0 0.0
        %336 = vmatprep.subr.mxu0 0.0
        %337 = vmatpush2.msra.mxu0 0.0
        %338 = vmatprep.subr.mxu0 0.0
        %339 = vmatpush2.msra.mxu0 0.0
        %340 = vmatprep.subr.mxu0 0.0
        %341 = vmatpush2.msra.mxu0 0.0
        %342 = vmatprep.subr.mxu0 0.0
        %343 = vmatpush2.msra.mxu0 0.0
        %344 = vmatprep.subr.mxu0 0.0
        %345 = vmatpush2.msra.mxu0 0.0
        %346 = vmatprep.subr.mxu0 0.0
        %347 = vmatpush2.msra.mxu0 0.0
        %348 = vmatprep.mubr.f32.mxu0 0.0
        %349 = vmatmul.mubr.f32.gmra.mxu0 %v282
        %v350 = vpop.f32.mrf.mxu0
        %v351 = vadd.f32 %v273, %v350
        %v352 = vpop.f32.mrf.mxu0
        %353 = vdwg.mxu0
        %v354 = vmax.f32 %v351, 0.0
        %v355 = vld [vmem:[#allocation7] sm:$0xff]
        %v356 = vld [vmem:[%s4] sm:$0x1]
        %v358 = vsel %vm281, %v354, 0
        %360 = vmatprep.subr.mxu0 0.0
        %361 = vmatpush1.msra.mxu0 0.0
        %362 = vmatprep.subr.mxu0 0.0
        %363 = vmatpush1.msra.mxu0 0.0
        %364 = vmatprep.subr.mxu0 0.0
        %365 = vmatpush1.msra.mxu0 0.0
        %366 = vmatprep.subr.mxu0 0.0
        %367 = vmatpush1.msra.mxu0 0.0
        %368 = vmatprep.subr.mxu0 0.0
        %369 = vmatpush1.msra.mxu0 0.0
        %370 = vmatprep.subr.mxu0 0.0
        %371 = vmatpush1.msra.mxu0 0.0
        %372 = vmatprep.subr.mxu0 0.0
        %373 = vmatpush1.msra.mxu0 0.0
        %374 = vmatprep.subr.mxu0 0.0
        %375 = vmatpush1.msra.mxu0 0.0
        %376 = vmatprep.subr.mxu0 0.0
        %377 = vmatpush1.msra.mxu0 0.0
        %378 = vmatprep.subr.mxu0 0.0
        %379 = vmatpush1.msra.mxu0 0.0
        %380 = vmatprep.subr.mxu0 0.0
        %381 = vmatpush1.msra.mxu0 0.0
        %382 = vmatprep.subr.mxu0 0.0
        %383 = vmatpush1.msra.mxu0 0.0
        %384 = vmatprep.subr.mxu0 0.0
        %385 = vmatpush1.msra.mxu0 0.0
        %386 = vmatprep.subr.mxu0 0.0
        %387 = vmatpush1.msra.mxu0 0.0
        %388 = vmatprep.subr.mxu0 0.0
        %389 = vmatpush1.msra.mxu0 0.0
        %390 = vmatprep.subr.mxu0 0.0
        %391 = vmatpush1.msra.mxu0 %v355
        %392 = vmatprep.subr.mxu0 0.0
        %393 = vmatpush2.msra.mxu0 0.0
        %394 = vmatprep.subr.mxu0 0.0
        %395 = vmatpush2.msra.mxu0 0.0
        %396 = vmatprep.subr.mxu0 0.0
        %397 = vmatpush2.msra.mxu0 0.0
        %398 = vmatprep.subr.mxu0 0.0
        %399 = vmatpush2.msra.mxu0 0.0
        %400 = vmatprep.subr.mxu0 0.0
        %401 = vmatpush2.msra.mxu0 0.0
        %402 = vmatprep.subr.mxu0 0.0
        %403 = vmatpush2.msra.mxu0 0.0
        %404 = vmatprep.subr.mxu0 0.0
        %405 = vmatpush2.msra.mxu0 0.0
        %406 = vmatprep.subr.mxu0 0.0
        %407 = vmatpush2.msra.mxu0 0.0
        %408 = vmatprep.subr.mxu0 0.0
        %409 = vmatpush2.msra.mxu0 0.0
        %410 = vmatprep.subr.mxu0 0.0
        %411 = vmatpush2.msra.mxu0 0.0
        %412 = vmatprep.subr.mxu0 0.0
        %413 = vmatpush2.msra.mxu0 0.0
        %414 = vmatprep.subr.mxu0 0.0
        %415 = vmatpush2.msra.mxu0 0.0
        %416 = vmatprep.subr.mxu0 0.0
        %417 = vmatpush2.msra.mxu0 0.0
        %418 = vmatprep.subr.mxu0 0.0
        %419 = vmatpush2.msra.mxu0 0.0
        %420 = vmatprep.subr.mxu0 0.0
        %421 = vmatpush2.msra.mxu0 0.0
        %422 = vmatprep.subr.mxu0 0.0
        %423 = vmatpush2.msra.mxu0 0.0
        %424 = vmatprep.mubr.f32.mxu0 0.0
        %425 = vmatmul.mubr.f32.gmra.mxu0 %v358
        %v426 = vpop.f32.mrf.mxu0
        %v427 = vadd.f32 %v356, %v426
        %v428 = vpop.f32.mrf.mxu0
        %429 = vdwg.mxu0
        %v430 = vxor.u32 %v427, 2147483648
        %v431 = vmul.f32 %v430, 1.442695
        %v432 = vpow.pop %v431
        %v433 = vadd.f32 %v432, 1.0
        %v434 = vrcp.pop %v433
        %v435 = vmul.f32 1.0, %v434
        %v436 = vlaneseq
        %v437 = vshrl.u32 %v436, 7
        %v438 = vsub.s32 0, %v437
        %v439 = vrot.slane %v435, %v438
        %441 = vbcast.lane.b32.xlu0 %v439, 256
        %v442 = vpop.permute.xlu0 %441
        %v443 = vmul.f32 %v442, %v266
        %v444 = vmul.f32 %v442, %v267
        %445 = vst [vmem:[%s265] sm:$0xff] %v443
        %446 = vst [vmem:[%s265 + $0x8] sm:$0xff] %v444
        %s447 = sand.u32 %s141, 1
        %s448 = scalar_lea.sflag [#allocation4], %s447
        %s449 = sand.u32 %s141, 1
        %s450 = smul.addr %s449, 16
        %s451 = scalar_lea.vmem [#allocation8], %s450
        // Predicated region
        $region53: #{tpu_custom_call.1} parent=39 // pred_check
          %p452 = pneg %p151
        $region54: #{tpu_custom_call.1} parent=39 // pred_check_branch
          %454 = sbr.rel (%p452) target = $region56
        $region55: #{tpu_custom_call.1} parent=39 // pred_region
          %s456 = ssub.s32 256, 256
          %457 = vsyncadd %s448, %s456
          %s458 = smul.addr %s23, 2
          %s459 = smul.addr %s458, 128
          %s460 = scalar_lea.hbm %s5, %s459
          %s462 = sshll.u32 %s451, 4
          %s463 = int_to_ptr.vmem [resolvable:$true] %s462
          %465 = dma.vmem_to_hbm [thread:$0]  %s463, 256, %s460, %s448
        $region56: #{tpu_custom_call.1} parent=39 // pred_fallthru
          _
      $region40: #{tpu_custom_call.1} parent=5 // pred_fallthru
        _
      %p466 = scmp.le.s32.totalorder 2, %s18
      // Predicated region
      $region57: #{tpu_custom_call.1} parent=5 // pred_check
        %p467 = pneg %p466
      $region58: #{tpu_custom_call.1} parent=5 // pred_check_branch
        %469 = sbr.rel (%p467) target = $region60
      $region59: #{tpu_custom_call.1} parent=5 // pred_region
        %s470 = ssub.s32 %s18, 2
        // Predicated region
        $region61: #{tpu_custom_call.1} parent=59 // pred_check
          %p471 = pneg %p157
        $region62: #{tpu_custom_call.1} parent=59 // pred_check_branch
          %473 = sbr.rel (%p471) target = $region64
        $region63: #{tpu_custom_call.1} parent=59 // pred_region
          %s474 = sand.u32 %s142, 1
          %s475 = scalar_lea.sflag [#allocation4], %s474
          %s476 = sand.u32 %s142, 1
          %s477 = smul.addr %s476, 16
          %s478 = scalar_lea.vmem [#allocation8], %s477
          %479 = dma.done %s475, 256
        $region64: #{tpu_custom_call.1} parent=59 // pred_fallthru
          _
      $region60: #{tpu_custom_call.1} parent=5 // pred_fallthru
        _
    $region6: #{tpu_custom_call.1} parent=1 // loop_footer
      %s22 = sadd.s32 1, %s18
    $region7: #{tpu_custom_call.1} parent=1 // loop_footer_branch
      %17 = sbr.rel target = $region3
    $region8: #{tpu_custom_call.1} parent=1 // loop_exit
      _
    %480 = vsyncpa [#allocation3], 1
    %s481 = scalar_lea.sflag [#allocation3], 1
    %482 = vsyncpa %s481, 1
    %483 = vsyncpa [#allocation6], 1
    %484 = vsyncpa [#allocation4], 1
    %s485 = scalar_lea.sflag [#allocation4], 1
    %486 = vsyncpa %s485, 1

</llo_original>
